<compile_context>
chip_gen: v7x
topology: tpu7x:2x2x1
jax: 0.10.0
libtpu: 0.0.40
codegen_flags: <defaults>
</compile_context>

<pallas_src>
import functools

import jax
import jax.numpy as jnp
from jax import lax
from jax.experimental import pallas as pl
from jax.experimental.pallas import tpu as pltpu

_PAD_LABEL = -1  # sentinel for padded rows/cols; validity masks guard it anyway


def _pairwise_dist_tile(e_rows, e_full, sq_rows, sq_cols, *, squared):
    """Distances between the TM anchor rows and all Bp columns -> f32 [TM, Bp]."""
    # Gram tile on the MXU; contract the feature dim of both operands so no
    # explicit transpose of e_full is needed.
    dot = lax.dot_general(
        e_rows, e_full,
        dimension_numbers=(((1,), (1,)), ((), ())),
        preferred_element_type=jnp.float32,
    )                                                   # [TM, Bp]
    dist = sq_cols - 2.0 * dot + sq_rows                # [TM, Bp]
    dist = jnp.maximum(dist, 0.0)
    if not squared:
        zero = dist == 0.0
        dist = jnp.sqrt(jnp.where(zero, jnp.float32(1e-16), dist))
        dist = jnp.where(zero, jnp.float32(0.0), dist)
    return dist


def _triplet_kernel(labels_col_ref, labels_row_ref, sq_cols_ref, sq_rows_ref,
                    emb_rows_ref, emb_full_ref, out_ref, colmax_ref,
                    *, margin, squared, b_true, bp, tm):
    phase = pl.program_id(0)          # 0: column-max pass, 1: loss pass
    i = pl.program_id(1)              # anchor-row tile index
    padded = bp != b_true             # static Python bool

    e_rows = emb_rows_ref[...]                                     # [TM, D]
    e_full = emb_full_ref[...]                                     # [Bp, D]
    sq_rows = sq_rows_ref[...]                                     # [TM, 1] f32
    sq_cols = sq_cols_ref[...]                                     # [1, Bp] f32

    dist = _pairwise_dist_tile(e_rows, e_full, sq_rows, sq_cols, squared=squared)

    @pl.when((phase == 0) & (i == 0))
    def _init():
        out_ref[...] = jnp.zeros_like(out_ref)
        colmax_ref[...] = jnp.zeros_like(colmax_ref)   # dist >= 0, 0 is identity

    @pl.when(phase == 0)
    def _colmax_pass():
        d = dist
        if padded:
            row_idx = i * tm + lax.broadcasted_iota(jnp.int32, (tm, bp), 0)
            d = jnp.where(row_idx < b_true, d, 0.0)    # drop padded anchor rows
        colmax_ref[...] = jnp.maximum(
            colmax_ref[...], jnp.max(d, axis=0, keepdims=True))

    @pl.when(phase == 1)
    def _loss_pass():
        lab_r = labels_row_ref[...]                    # [TM, 1] int32
        lab_c = labels_col_ref[...]                    # [1, Bp] int32
        labels_equal = lab_r == lab_c                  # [TM, Bp] bool (broadcast)

        row_idx = i * tm + lax.broadcasted_iota(jnp.int32, (tm, bp), 0)
        col_idx = lax.broadcasted_iota(jnp.int32, (tm, bp), 1)
        not_eye = row_idx != col_idx

        pos_mask = jnp.logical_and(not_eye, labels_equal)
        if padded:
            col_ok = col_idx < b_true
            pos_mask = jnp.logical_and(pos_mask, col_ok)

        # hardest positive per anchor (bool select, no float-mask multiply)
        hp = jnp.max(jnp.where(pos_mask, dist, 0.0), axis=1, keepdims=True)

        # hardest negative -- reproduces the torch broadcast quirk exactly:
        # max(dist, dim=1) is shape [B] and broadcasts along the LAST dim, so
        # row-j's max is added to COLUMN j (not to anchor i's own row).  dist is
        # symmetric, so the per-column max accumulated in phase 0 equals that
        # per-row max.  Do NOT "fix" this to a [B,1] broadcast -- it would
        # silently change semantics vs. the reference module.
        an = dist + jnp.where(labels_equal, colmax_ref[...], jnp.float32(0.0))
        if padded:
            an = jnp.where(col_ok, an, jnp.float32(1e30))  # pads never win the min
        hn = jnp.min(an, axis=1, keepdims=True)            # [TM, 1]

        per_anchor = jnp.maximum(hp - hn + jnp.float32(margin), 0.0)  # [TM, 1]
        if padded:
            r1 = i * tm + lax.broadcasted_iota(jnp.int32, (tm, 1), 0)
            per_anchor = jnp.where(r1 < b_true, per_anchor, 0.0)

        tile_sum = jnp.sum(per_anchor, axis=0, keepdims=True)         # [1, 1]
        out_ref[...] += tile_sum * jnp.float32(1.0 / b_true)


def triplet_loss(labels, embeddings, *, margin=0.2, squared=False,
                 anchor_tile=256):
    """Batch-hard triplet loss (matches the torch module with batch_all=False)."""
    B, D = embeddings.shape

    # bf16 embeddings go straight to the MXU (f32 accumulate); anything else
    # is promoted to f32.
    if embeddings.dtype not in (jnp.bfloat16, jnp.float32):
        embeddings = embeddings.astype(jnp.float32)

    # Anchor-row tile: multiple of 8 sublanes, capped (default 256) so live
    # [TM, Bp] f32 temporaries stay inside v7x's 64 MiB VMEM at large B.
    tm = min(int(anchor_tile), max(8, B))
    tm = max(8, (tm // 8) * 8)
    nt = -(-B // tm)                      # ceil
    bp = nt * tm                          # pad rows/cols to a tile multiple
    pad = bp - B

    emb_p = jnp.pad(embeddings, ((0, pad), (0, 0))) if pad else embeddings
    labels_i = labels.astype(jnp.int32)
    if pad:
        labels_i = jnp.concatenate(
            [labels_i, jnp.full((pad,), _PAD_LABEL, jnp.int32)])
    labels_col = labels_i.reshape(1, bp)        # column labels, lane-dense
    labels_row = labels_i.reshape(bp, 1)        # row labels (no in-kernel transpose)

    emb_f32 = emb_p.astype(jnp.float32)
    sq = jnp.sum(emb_f32 * emb_f32, axis=1)                       # [Bp] f32
    sq_cols = sq.reshape(1, bp)                                   # lane-dense
    sq_rows = sq.reshape(bp, 1)                                   # sublane-dense

    kernel = functools.partial(
        _triplet_kernel, margin=float(margin), squared=bool(squared),
        b_true=B, bp=bp, tm=tm)

    out = pl.pallas_call(
        kernel,
        out_shape=jax.ShapeDtypeStruct((1, 1), jnp.float32),
        grid=(2, nt),
        in_specs=[
            pl.BlockSpec((1, bp), lambda p, i: (0, 0)),   # labels (columns)
            pl.BlockSpec((tm, 1), lambda p, i: (i, 0)),   # labels (anchor rows)
            pl.BlockSpec((1, bp), lambda p, i: (0, 0)),   # column squared norms
            pl.BlockSpec((tm, 1), lambda p, i: (i, 0)),   # anchor-row squared norms
            pl.BlockSpec((tm, D), lambda p, i: (i, 0)),   # anchor-row emb tile
            pl.BlockSpec((bp, D), lambda p, i: (0, 0)),   # full emb (fetched once)
        ],
        out_specs=pl.BlockSpec((1, 1), lambda p, i: (0, 0)),
        scratch_shapes=[pltpu.VMEM((1, bp), jnp.float32)],   # per-column maxes
        compiler_params=pltpu.CompilerParams(
            dimension_semantics=("arbitrary", "arbitrary")),
    )(labels_col, labels_row, sq_cols, sq_rows, emb_p, emb_p)
    return out[0, 0]


def _triplet_loss_ref(labels, emb, margin=0.2, squared=False):
    """Pure-JAX reference mirroring the torch module (batch_all=False)."""
    emb = emb.astype(jnp.float32)
    B = emb.shape[0]
    dot = emb @ emb.T
    sq = jnp.diag(dot)
    dist = sq[None, :] - 2.0 * dot + sq[:, None]
    dist = jnp.maximum(dist, 0.0)
    if not squared:
        m = (dist == 0.0).astype(jnp.float32)
        dist = jnp.sqrt(dist + m * 1e-16) * (1.0 - m)
    eq = labels[None, :] == labels[:, None]
    not_eye = ~jnp.eye(B, dtype=bool)
    hp = jnp.max((not_eye & eq).astype(jnp.float32) * dist, axis=1)
    max_row = jnp.max(dist, axis=1)
    an = dist + max_row[None, :] * eq.astype(jnp.float32)   # torch [B]*[B,B] broadcast
    hn = jnp.min(an, axis=1)
    return jnp.mean(jnp.maximum(hp - hn + margin, 0.0))


if __name__ == "__main__":
    key = jax.random.PRNGKey(0)
    k_emb, k_lab = jax.random.split(key)

    margin = 0.2

    # Primary check: B=8, D=32 (no padding path), squared=False.
    B, D = 8, 32
    embeddings = jax.random.normal(k_emb, (B, D), dtype=jnp.float32)
    labels = jax.random.randint(k_lab, (B,), 0, 3, dtype=jnp.int32)

    loss = triplet_loss(labels, embeddings, margin=margin, squared=False)
    loss = jax.block_until_ready(loss)
    ref = _triplet_loss_ref(labels, embeddings, margin=margin, squared=False)
    assert jnp.isfinite(loss), "loss is not finite"
    assert jnp.allclose(loss, ref, atol=1e-5, rtol=1e-5), (loss, ref)

    # Secondary check: squared distances.
    loss_sq = triplet_loss(labels, embeddings, margin=margin, squared=True)
    loss_sq = jax.block_until_ready(loss_sq)
    ref_sq = _triplet_loss_ref(labels, embeddings, margin=margin, squared=True)
    assert jnp.allclose(loss_sq, ref_sq, atol=1e-5, rtol=1e-5), (loss_sq, ref_sq)

    # Tertiary check: B not a multiple of the tile (exercises the padding path).
    B2 = 10
    emb2 = jax.random.normal(jax.random.PRNGKey(7), (B2, D), dtype=jnp.float32)
    lab2 = jax.random.randint(jax.random.PRNGKey(11), (B2,), 0, 3, dtype=jnp.int32)
    loss2 = triplet_loss(lab2, emb2, margin=margin, squared=False)
    loss2 = jax.block_until_ready(loss2)
    ref2 = _triplet_loss_ref(lab2, emb2, margin=margin, squared=False)
    assert jnp.allclose(loss2, ref2, atol=1e-5, rtol=1e-5), (loss2, ref2)

    print("KERNEL_OK")
</pallas_src>

<mosaic_0001>
module attributes {stable_mosaic.version = 11 : i64} {
  func.func @_triplet_kernel(%arg0: i32, %arg1: i32, %arg2: memref<1x8xi32, #tpu.memory_space<vmem>>, %arg3: memref<8x1xi32, #tpu.memory_space<vmem>>, %arg4: memref<1x8xf32, #tpu.memory_space<vmem>>, %arg5: memref<8x1xf32, #tpu.memory_space<vmem>>, %arg6: memref<8x32xf32, #tpu.memory_space<vmem>>, %arg7: memref<8x32xf32, #tpu.memory_space<vmem>>, %arg8: memref<1x1xf32, #tpu.memory_space<vmem>>, %arg9: memref<1x8xf32, #tpu.memory_space<vmem>>) attributes {dimension_semantics = [#tpu.dimension_semantics<arbitrary>, #tpu.dimension_semantics<arbitrary>], iteration_bounds = array<i64: 2, 1>, scalar_prefetch = 0 : i64, scratch_operands = 1 : i64, tpu.core_type = #tpu.core_type<tc>, window_params = [{pipeline_mode = #tpu.pipeline_mode<synchronous>, transform_indices = @transform_0, window_bounds = array<i64: 1, 8>}, {transform_indices = @transform_1, window_bounds = array<i64: 8, 1>}, {pipeline_mode = #tpu.pipeline_mode<synchronous>, transform_indices = @transform_2, window_bounds = array<i64: 1, 8>}, {transform_indices = @transform_3, window_bounds = array<i64: 8, 1>}, {transform_indices = @transform_4, window_bounds = array<i64: 8, 32>}, {pipeline_mode = #tpu.pipeline_mode<synchronous>, transform_indices = @transform_5, window_bounds = array<i64: 8, 32>}, {pipeline_mode = #tpu.pipeline_mode<synchronous>, transform_indices = @transform_6, window_bounds = array<i64: 1, 1>}]} {
    %c0 = arith.constant 0 : index
    %c0_0 = arith.constant 0 : index
    %0 = vector.load %arg6[%c0, %c0_0] : memref<8x32xf32, #tpu.memory_space<vmem>>, vector<8x32xf32>
    %c0_1 = arith.constant 0 : index
    %c0_2 = arith.constant 0 : index
    %1 = vector.load %arg7[%c0_1, %c0_2] : memref<8x32xf32, #tpu.memory_space<vmem>>, vector<8x32xf32>
    %c0_3 = arith.constant 0 : index
    %c0_4 = arith.constant 0 : index
    %2 = vector.load %arg5[%c0_3, %c0_4] : memref<8x1xf32, #tpu.memory_space<vmem>>, vector<8x1xf32>
    %c0_5 = arith.constant 0 : index
    %c0_6 = arith.constant 0 : index
    %3 = vector.load %arg4[%c0_5, %c0_6] : memref<1x8xf32, #tpu.memory_space<vmem>>, vector<1x8xf32>
    %cst = arith.constant dense<0.000000e+00> : vector<8x8xf32>
    %4 = tpu.matmul %0, %1, %cst {dimension_numbers = #tpu.dot_dimension_numbers<[1], [1], [0], [0], [0, 0, 1, 0], [], []>} : vector<8x32xf32>, vector<8x32xf32>, vector<8x8xf32> -> vector<8x8xf32>
    %cst_7 = arith.constant 2.000000e+00 : f32
    %5 = vector.broadcast %cst_7 : f32 to vector<8x8xf32>
    %6 = arith.mulf %5, %4 : vector<8x8xf32>
    %7 = vector.broadcast %3 : vector<1x8xf32> to vector<8x8xf32>
    %8 = arith.subf %7, %6 : vector<8x8xf32>
    %9 = vector.broadcast %2 : vector<8x1xf32> to vector<8x8xf32>
    %10 = arith.addf %8, %9 : vector<8x8xf32>
    %cst_8 = arith.constant 0.000000e+00 : f32
    %11 = vector.broadcast %cst_8 : f32 to vector<8x8xf32>
    %12 = arith.maximumf %10, %11 : vector<8x8xf32>
    %cst_9 = arith.constant 0.000000e+00 : f32
    %13 = vector.broadcast %cst_9 : f32 to vector<8x8xf32>
    %14 = arith.cmpf oeq, %12, %13 : vector<8x8xf32>
    %cst_10 = arith.constant 1.000000e-16 : f32
    %15 = vector.broadcast %cst_10 : f32 to vector<8x8xf32>
    %16 = arith.select %14, %15, %12 : vector<8x8xi1>, vector<8x8xf32>
    %17 = math.sqrt %16 : vector<8x8xf32>
    %cst_11 = arith.constant 0.000000e+00 : f32
    %18 = vector.broadcast %cst_11 : f32 to vector<8x8xf32>
    %19 = arith.select %14, %18, %17 : vector<8x8xi1>, vector<8x8xf32>
    %c0_i32 = arith.constant 0 : i32
    %20 = arith.cmpi eq, %arg0, %c0_i32 : i32
    %c0_i32_12 = arith.constant 0 : i32
    %21 = arith.cmpi eq, %arg1, %c0_i32_12 : i32
    %22 = arith.andi %20, %21 : i1
    %23 = arith.extui %22 : i1 to i32
    %c0_i32_13 = arith.constant 0 : i32
    %24 = arith.cmpi ne, %23, %c0_i32_13 : i32
    scf.if %24 {
      %cst_17 = arith.constant 0.000000e+00 : f32
      %31 = vector.broadcast %cst_17 : f32 to vector<1x1xf32>
      %c0_18 = arith.constant 0 : index
      %c0_19 = arith.constant 0 : index
      %32 = vector.load %arg8[%c0_18, %c0_19] : memref<1x1xf32, #tpu.memory_space<vmem>>, vector<1x1xf32>
      tpu.vector_store %arg8[%c0_18, %c0_19], %31 {strides = array<i32>} : memref<1x1xf32, #tpu.memory_space<vmem>>, vector<1x1xf32>,
      %cst_20 = arith.constant 0.000000e+00 : f32
      %33 = vector.broadcast %cst_20 : f32 to vector<1x8xf32>
      %c0_21 = arith.constant 0 : index
      %c0_22 = arith.constant 0 : index
      %34 = vector.load %arg9[%c0_21, %c0_22] : memref<1x8xf32, #tpu.memory_space<vmem>>, vector<1x8xf32>
      tpu.vector_store %arg9[%c0_21, %c0_22], %33 {strides = array<i32>} : memref<1x8xf32, #tpu.memory_space<vmem>>, vector<1x8xf32>,
    } else {
    }
    %c0_i32_14 = arith.constant 0 : i32
    %25 = arith.cmpi eq, %arg0, %c0_i32_14 : i32
    %26 = arith.extui %25 : i1 to i32
    %c0_i32_15 = arith.constant 0 : i32
    %27 = arith.cmpi ne, %26, %c0_i32_15 : i32
    scf.if %27 {
      %c0_17 = arith.constant 0 : index
      %c0_18 = arith.constant 0 : index
      %31 = vector.load %arg9[%c0_17, %c0_18] : memref<1x8xf32, #tpu.memory_space<vmem>>, vector<1x8xf32>
      %cst_19 = arith.constant dense<0xFF800000> : vector<8xf32>
      %32 = vector.multi_reduction <maximumf>, %19, %cst_19 [0] : vector<8x8xf32> to vector<8xf32>
      %33 = vector.shape_cast %32 : vector<8xf32> to vector<1x8xf32>
      %34 = arith.maximumf %31, %33 : vector<1x8xf32>
      %c0_20 = arith.constant 0 : index
      %c0_21 = arith.constant 0 : index
      %35 = vector.load %arg9[%c0_20, %c0_21] : memref<1x8xf32, #tpu.memory_space<vmem>>, vector<1x8xf32>
      tpu.vector_store %arg9[%c0_20, %c0_21], %34 {strides = array<i32>} : memref<1x8xf32, #tpu.memory_space<vmem>>, vector<1x8xf32>,
    } else {
    }
    %c1_i32 = arith.constant 1 : i32
    %28 = arith.cmpi eq, %arg0, %c1_i32 : i32
    %29 = arith.extui %28 : i1 to i32
    %c0_i32_16 = arith.constant 0 : i32
    %30 = arith.cmpi ne, %29, %c0_i32_16 : i32
    scf.if %30 {
      %c0_17 = arith.constant 0 : index
      %c0_18 = arith.constant 0 : index
      %31 = vector.load %arg3[%c0_17, %c0_18] : memref<8x1xi32, #tpu.memory_space<vmem>>, vector<8x1xi32>
      %c0_19 = arith.constant 0 : index
      %c0_20 = arith.constant 0 : index
      %32 = vector.load %arg2[%c0_19, %c0_20] : memref<1x8xi32, #tpu.memory_space<vmem>>, vector<1x8xi32>
      %33 = vector.broadcast %31 : vector<8x1xi32> to vector<8x8xi32>
      %34 = vector.broadcast %32 : vector<1x8xi32> to vector<8x8xi32>
      %35 = arith.cmpi eq, %33, %34 : vector<8x8xi32>
      %c8_i32 = arith.constant 8 : i32
      %36 = arith.muli %arg1, %c8_i32 : i32
      %37 = tpu.iota {dimensions = array<i32: 0>} : vector<8x8xi32>
      %38 = vector.broadcast %36 : i32 to vector<8x8xi32>
      %39 = arith.addi %38, %37 : vector<8x8xi32>
      %40 = tpu.iota {dimensions = array<i32: 1>} : vector<8x8xi32>
      %41 = arith.cmpi ne, %39, %40 : vector<8x8xi32>
      %42 = arith.andi %41, %35 : vector<8x8xi1>
      %cst_21 = arith.constant 0.000000e+00 : f32
      %43 = vector.broadcast %cst_21 : f32 to vector<8x8xf32>
      %44 = arith.select %42, %19, %43 : vector<8x8xi1>, vector<8x8xf32>
      %cst_22 = arith.constant dense<0xFF800000> : vector<8xf32>
      %45 = vector.multi_reduction <maximumf>, %44, %cst_22 [1] : vector<8x8xf32> to vector<8xf32>
      %46 = vector.shape_cast %45 : vector<8xf32> to vector<8x1xf32>
      %c0_23 = arith.constant 0 : index
      %c0_24 = arith.constant 0 : index
      %47 = vector.load %arg9[%c0_23, %c0_24] : memref<1x8xf32, #tpu.memory_space<vmem>>, vector<1x8xf32>
      %cst_25 = arith.constant 0.000000e+00 : f32
      %48 = vector.shape_cast %47 : vector<1x8xf32> to vector<1x8xf32>
      %49 = vector.broadcast %48 : vector<1x8xf32> to vector<8x8xf32>
      %50 = vector.broadcast %cst_25 : f32 to vector<8x8xf32>
      %51 = arith.select %35, %49, %50 : vector<8x8xi1>, vector<8x8xf32>
      %52 = arith.addf %19, %51 : vector<8x8xf32>
      %cst_26 = arith.constant dense<0x7F800000> : vector<8xf32>
      %53 = vector.multi_reduction <minimumf>, %52, %cst_26 [1] : vector<8x8xf32> to vector<8xf32>
      %54 = vector.shape_cast %53 : vector<8xf32> to vector<8x1xf32>
      %55 = arith.subf %46, %54 : vector<8x1xf32>
      %cst_27 = arith.constant 2.000000e-01 : f32
      %56 = vector.broadcast %cst_27 : f32 to vector<8x1xf32>
      %57 = arith.addf %55, %56 : vector<8x1xf32>
      %cst_28 = arith.constant 0.000000e+00 : f32
      %58 = vector.broadcast %cst_28 : f32 to vector<8x1xf32>
      %59 = arith.maximumf %57, %58 : vector<8x1xf32>
      %cst_29 = arith.constant dense<0.000000e+00> : vector<1xf32>
      %60 = vector.multi_reduction <add>, %59, %cst_29 [0] : vector<8x1xf32> to vector<1xf32>
      %61 = vector.shape_cast %60 : vector<1xf32> to vector<1x1xf32>
      %c0_30 = arith.constant 0 : index
      %c0_31 = arith.constant 0 : index
      %62 = vector.load %arg8[%c0_30, %c0_31] : memref<1x1xf32, #tpu.memory_space<vmem>>, vector<1x1xf32>
      %cst_32 = arith.constant 1.250000e-01 : f32
      %63 = vector.broadcast %cst_32 : f32 to vector<1x1xf32>
      %64 = arith.mulf %61, %63 : vector<1x1xf32>
      %65 = arith.addf %62, %64 : vector<1x1xf32>
      %c0_33 = arith.constant 0 : index
      %c0_34 = arith.constant 0 : index
      %66 = vector.load %arg8[%c0_33, %c0_34] : memref<1x1xf32, #tpu.memory_space<vmem>>, vector<1x1xf32>
      tpu.vector_store %arg8[%c0_33, %c0_34], %65 {strides = array<i32>} : memref<1x1xf32, #tpu.memory_space<vmem>>, vector<1x1xf32>,
    } else {
    }
    return
  }
  func.func @transform_0(%arg0: i32, %arg1: i32) -> (i32, i32) {
    %c0_i32 = arith.constant 0 : i32
    %c0_i32_0 = arith.constant 0 : i32
    %c0_i32_1 = arith.constant 0 : i32
    return %c0_i32, %c0_i32_0 : i32, i32
  }
  func.func @transform_1(%arg0: i32, %arg1: i32) -> (i32, i32) {
    %c0_i32 = arith.constant 0 : i32
    %c0_i32_0 = arith.constant 0 : i32
    return %arg1, %c0_i32 : i32, i32
  }
  func.func @transform_2(%arg0: i32, %arg1: i32) -> (i32, i32) {
    %c0_i32 = arith.constant 0 : i32
    %c0_i32_0 = arith.constant 0 : i32
    %c0_i32_1 = arith.constant 0 : i32
    return %c0_i32, %c0_i32_0 : i32, i32
  }
  func.func @transform_3(%arg0: i32, %arg1: i32) -> (i32, i32) {
    %c0_i32 = arith.constant 0 : i32
    %c0_i32_0 = arith.constant 0 : i32
    return %arg1, %c0_i32 : i32, i32
  }
  func.func @transform_4(%arg0: i32, %arg1: i32) -> (i32, i32) {
    %c0_i32 = arith.constant 0 : i32
    %c0_i32_0 = arith.constant 0 : i32
    return %arg1, %c0_i32 : i32, i32
  }
  func.func @transform_5(%arg0: i32, %arg1: i32) -> (i32, i32) {
    %c0_i32 = arith.constant 0 : i32
    %c0_i32_0 = arith.constant 0 : i32
    %c0_i32_1 = arith.constant 0 : i32
    return %c0_i32, %c0_i32_0 : i32, i32
  }
  func.func @transform_6(%arg0: i32, %arg1: i32) -> (i32, i32) {
    %c0_i32 = arith.constant 0 : i32
    %c0_i32_0 = arith.constant 0 : i32
    %c0_i32_1 = arith.constant 0 : i32
    return %c0_i32, %c0_i32_0 : i32, i32
  }
}

</mosaic_0001>

<llo_original>
// kernel: tpu_custom_call.1
$region0: #{tpu_custom_call.1}
  #allocation0 [shape = 'u32[]', space=smem, size = 0x4, offset = 0x4, fixed_abs, tag = 'smem constant byte address 0x4 - core index']
  #allocation1 [shape = 'u32[144,128]{1,0:T(1,128)}', space=vmem, size = 0x12000, scoped, tag = 'internal scratch']
  #allocation2 [shape = 'f32[1,8]{1,0:T(1,128)}', space=vmem, size = 0x200, scoped, tag = 'scratch operand']
  %s0 = inlined_call_operand.vmem [shape: s32[1,8], index: 0, kind: input, shape index: {}]
  %s1 = inlined_call_operand.vmem [shape: s32[8,1], index: 1, kind: input, shape index: {}]
  %s2 = inlined_call_operand.vmem [shape: f32[1,8], index: 2, kind: input, shape index: {}]
  %s3 = inlined_call_operand.vmem [shape: f32[8,1], index: 3, kind: input, shape index: {}]
  %s4 = inlined_call_operand.vmem [shape: f32[8,32], index: 4, kind: input, shape index: {}]
  %s5 = inlined_call_operand.vmem [shape: f32[8,32], index: 5, kind: input, shape index: {}]
  %s6 = inlined_call_operand.hbm [shape: f32[1,1], index: 6, kind: output, shape index: {}]
  %s7 = sld [smem:[#allocation0]]
  $region69: #{tpu_custom_call.1} parent=0
    _
  %s9 = ssub.s32 1, %s7
  %s10 = scalar_select 0, %s9, %s7
  $region1: #{tpu_custom_call.1} parent=0
    #allocation3 [shape = 'u8[512]{0}', space=vmem, size = 0x400, scoped, tag = 'output window, operand 0, single buffered']
    #allocation4 [shape = 's32[2]{0}', space=sflag, size = 0x8, scoped, tag = 'scoped memory for tpu_custom_call.1']
    %11 = vsyncpa [#allocation4], 0
    loop: start=0, step=1, limit=4
    $region2: #{tpu_custom_call.1} parent=1 // loop_pre_header
      _
    $region3: #{tpu_custom_call.1} parent=1 // loop_header
      %s13 = sphi 0, %s17
      %p14 = scmp.ge.s32.totalorder %s13, 4
      %s20 = sphi 0, %s32
      %s21 = sphi 0, %s28
      %s22 = sphi 0, %s20
      %s23 = sphi 0, %s21
      %s24 = sphi 0, %s22
      %s25 = sphi 0, %s23
      %s33 = sphi 0, %s33
      %s35 = sphi 0, %s33
      %s36 = sphi 0, %s35
      %s50 = sphi 0, %s36
      %s56 = sphi 0, %s58
      %s59 = sphi 0, %s56
      %s60 = sphi 0, %s59
      %s76 = sphi 0, %s60
      %s80 = sphi 0, %s80
      %s82 = sphi 0, %s80
      %s83 = sphi 0, %s82
      %s97 = sphi 0, %s83
      %s103 = sphi 0, %s105
      %s106 = sphi 0, %s103
      %s107 = sphi 0, %s106
      %s123 = sphi 0, %s107
      %s129 = sphi 0, %s131
      %s132 = sphi 0, %s129
      %s133 = sphi 0, %s132
      %s149 = sphi 0, %s133
      %s153 = sphi 0, %s153
      %s155 = sphi 0, %s153
      %s156 = sphi 0, %s155
      %s170 = sphi 0, %s156
      %s174 = sphi 0, %s174
      %s176 = sphi 0, %s174
      %s177 = sphi 0, %s176
      %s191 = sphi 0, %s177
    $region4: #{tpu_custom_call.1} parent=1 // loop_header_branch
      %16 = sbr.rel (%p14) target = $region8
    $region5: #{tpu_custom_call.1} parent=1 // loop_body
      %s18 = ssub.s32 %s13, 1
      %s19 = ssub.s32 %s13, 2
      %s26 = sadd.s32 1, %s21
      %p27 = scmp.ge.s32.totalorder %s26, 1
      %s28 = scalar_select %p27, 0, %s26
      %s29 = sadd.s32 1, %s20
      %s30 = scalar_select %p27, %s29, %s20
      %p31 = scmp.ge.s32.totalorder %s30, 2
      %s32 = scalar_select %p31, 0, %s30
      %s34 = sadd.s32 %s33, 1
      %p37 = scmp.eq.s32.totalorder %s13, 1
      %p38 = scmp.ne.s32.totalorder %s33, %s35
      %p39 = scmp.eq.s32.totalorder %s13, 0
      %p40 = por %p38, %p39
      %p41 = scmp.ne.s32.totalorder %s33, %s35
      %p42 = scmp.eq.s32.totalorder %s18, 1
      %p43 = por %p41, %p42
      %p44 = scmp.ne.s32.totalorder %s35, %s36
      %p45 = scmp.eq.s32.totalorder %s18, 0
      %p46 = por %p44, %p45
      %p47 = scmp.ne.s32.totalorder %s35, %s36
      %p48 = scmp.eq.s32.totalorder %s19, 1
      %p49 = por %p47, %p48
      %p51 = scmp.ne.s32.totalorder %s36, %s50
      %p52 = scmp.eq.s32.totalorder %s19, 0
      %p53 = por %p51, %p52
      %s54 = ssub.s32 %s21, %s28
      %p55 = scmp.eq.s32.totalorder %s54, 0
      %s57 = sadd.s32 %s56, 1
      %s58 = scalar_select %p55, %s56, %s57
      %p61 = pneg %p55
      %p62 = scmp.eq.s32.totalorder %s13, 1
      %p63 = por %p61, %p62
      %p64 = scmp.ne.s32.totalorder %s56, %s59
      %p65 = scmp.eq.s32.totalorder %s13, 0
      %p66 = por %p64, %p65
      %p67 = scmp.ne.s32.totalorder %s56, %s59
      %p68 = scmp.eq.s32.totalorder %s18, 1
      %p69 = por %p67, %p68
      %p70 = scmp.ne.s32.totalorder %s59, %s60
      %p71 = scmp.eq.s32.totalorder %s18, 0
      %p72 = por %p70, %p71
      %p73 = scmp.ne.s32.totalorder %s59, %s60
      %p74 = scmp.eq.s32.totalorder %s19, 1
      %p75 = por %p73, %p74
      %p77 = scmp.ne.s32.totalorder %s60, %s76
      %p78 = scmp.eq.s32.totalorder %s19, 0
      %p79 = por %p77, %p78
      %s81 = sadd.s32 %s80, 1
      %p84 = scmp.eq.s32.totalorder %s13, 1
      %p85 = scmp.ne.s32.totalorder %s80, %s82
      %p86 = scmp.eq.s32.totalorder %s13, 0
      %p87 = por %p85, %p86
      %p88 = scmp.ne.s32.totalorder %s80, %s82
      %p89 = scmp.eq.s32.totalorder %s18, 1
      %p90 = por %p88, %p89
      %p91 = scmp.ne.s32.totalorder %s82, %s83
      %p92 = scmp.eq.s32.totalorder %s18, 0
      %p93 = por %p91, %p92
      %p94 = scmp.ne.s32.totalorder %s82, %s83
      %p95 = scmp.eq.s32.totalorder %s19, 1
      %p96 = por %p94, %p95
      %p98 = scmp.ne.s32.totalorder %s83, %s97
      %p99 = scmp.eq.s32.totalorder %s19, 0
      %p100 = por %p98, %p99
      %s101 = ssub.s32 %s21, %s28
      %p102 = scmp.eq.s32.totalorder %s101, 0
      %s104 = sadd.s32 %s103, 1
      %s105 = scalar_select %p102, %s103, %s104
      %p108 = pneg %p102
      %p109 = scmp.eq.s32.totalorder %s13, 1
      %p110 = por %p108, %p109
      %p111 = scmp.ne.s32.totalorder %s103, %s106
      %p112 = scmp.eq.s32.totalorder %s13, 0
      %p113 = por %p111, %p112
      %p114 = scmp.ne.s32.totalorder %s103, %s106
      %p115 = scmp.eq.s32.totalorder %s18, 1
      %p116 = por %p114, %p115
      %p117 = scmp.ne.s32.totalorder %s106, %s107
      %p118 = scmp.eq.s32.totalorder %s18, 0
      %p119 = por %p117, %p118
      %p120 = scmp.ne.s32.totalorder %s106, %s107
      %p121 = scmp.eq.s32.totalorder %s19, 1
      %p122 = por %p120, %p121
      %p124 = scmp.ne.s32.totalorder %s107, %s123
      %p125 = scmp.eq.s32.totalorder %s19, 0
      %p126 = por %p124, %p125
      %s127 = ssub.s32 %s21, %s28
      %p128 = scmp.eq.s32.totalorder %s127, 0
      %s130 = sadd.s32 %s129, 1
      %s131 = scalar_select %p128, %s129, %s130
      %p134 = pneg %p128
      %p135 = scmp.eq.s32.totalorder %s13, 1
      %p136 = por %p134, %p135
      %p137 = scmp.ne.s32.totalorder %s129, %s132
      %p138 = scmp.eq.s32.totalorder %s13, 0
      %p139 = por %p137, %p138
      %p140 = scmp.ne.s32.totalorder %s129, %s132
      %p141 = scmp.eq.s32.totalorder %s18, 1
      %p142 = por %p140, %p141
      %p143 = scmp.ne.s32.totalorder %s132, %s133
      %p144 = scmp.eq.s32.totalorder %s18, 0
      %p145 = por %p143, %p144
      %p146 = scmp.ne.s32.totalorder %s132, %s133
      %p147 = scmp.eq.s32.totalorder %s19, 1
      %p148 = por %p146, %p147
      %p150 = scmp.ne.s32.totalorder %s133, %s149
      %p151 = scmp.eq.s32.totalorder %s19, 0
      %p152 = por %p150, %p151
      %s154 = sadd.s32 %s153, 1
      %p157 = scmp.eq.s32.totalorder %s13, 1
      %p158 = scmp.ne.s32.totalorder %s153, %s155
      %p159 = scmp.eq.s32.totalorder %s13, 0
      %p160 = por %p158, %p159
      %p161 = scmp.ne.s32.totalorder %s153, %s155
      %p162 = scmp.eq.s32.totalorder %s18, 1
      %p163 = por %p161, %p162
      %p164 = scmp.ne.s32.totalorder %s155, %s156
      %p165 = scmp.eq.s32.totalorder %s18, 0
      %p166 = por %p164, %p165
      %p167 = scmp.ne.s32.totalorder %s155, %s156
      %p168 = scmp.eq.s32.totalorder %s19, 1
      %p169 = por %p167, %p168
      %p171 = scmp.ne.s32.totalorder %s156, %s170
      %p172 = scmp.eq.s32.totalorder %s19, 0
      %p173 = por %p171, %p172
      %s175 = sadd.s32 %s174, 1
      %p178 = scmp.eq.s32.totalorder %s13, 1
      %p179 = scmp.ne.s32.totalorder %s174, %s176
      %p180 = scmp.eq.s32.totalorder %s13, 0
      %p181 = por %p179, %p180
      %p182 = scmp.ne.s32.totalorder %s174, %s176
      %p183 = scmp.eq.s32.totalorder %s18, 1
      %p184 = por %p182, %p183
      %p185 = scmp.ne.s32.totalorder %s176, %s177
      %p186 = scmp.eq.s32.totalorder %s18, 0
      %p187 = por %p185, %p186
      %p188 = scmp.ne.s32.totalorder %s176, %s177
      %p189 = scmp.eq.s32.totalorder %s19, 1
      %p190 = por %p188, %p189
      %p192 = scmp.ne.s32.totalorder %s177, %s191
      %p193 = scmp.eq.s32.totalorder %s19, 0
      %p194 = por %p192, %p193
      %p195 = scmp.le.s32.totalorder 1, %s13
      %p196 = scmp.lt.s32.totalorder %s13, 3
      %p197 = pnand %p195, %p196
      %p198 = pneg %p197
      // Predicated region
      $region9: #{tpu_custom_call.1} parent=5 // pred_check
        _
      $region10: #{tpu_custom_call.1} parent=5 // pred_check_branch
        %200 = sbr.rel (%p197) target = $region12
      $region11: #{tpu_custom_call.1} parent=5 // pred_region
        %s201 = ssub.s32 %s13, 1
        // Predicated region
        $region13: #{tpu_custom_call.1} parent=11 // pred_check
          %p202 = pneg %p46
        $region14: #{tpu_custom_call.1} parent=11 // pred_check_branch
          %204 = sbr.rel (%p202) target = $region16
        $region15: #{tpu_custom_call.1} parent=11 // pred_region
          _
        $region16: #{tpu_custom_call.1} parent=11 // pred_fallthru
          _
        // Predicated region
        $region17: #{tpu_custom_call.1} parent=11 // pred_check
          %p205 = pneg %p72
        $region18: #{tpu_custom_call.1} parent=11 // pred_check_branch
          %207 = sbr.rel (%p205) target = $region20
        $region19: #{tpu_custom_call.1} parent=11 // pred_region
          %p208 = scmp.lt.s32.totalorder %s23, 0
          %s209 = scalar_select %p208, %s23, 0
          %s210 = smul.addr %s209, 8
          %s211 = scalar_lea.vmem %s1, %s210
        $region20: #{tpu_custom_call.1} parent=11 // pred_fallthru
          _
        // Predicated region
        $region21: #{tpu_custom_call.1} parent=11 // pred_check
          %p212 = pneg %p93
        $region22: #{tpu_custom_call.1} parent=11 // pred_check_branch
          %214 = sbr.rel (%p212) target = $region24
        $region23: #{tpu_custom_call.1} parent=11 // pred_region
          _
        $region24: #{tpu_custom_call.1} parent=11 // pred_fallthru
          _
        // Predicated region
        $region25: #{tpu_custom_call.1} parent=11 // pred_check
          %p215 = pneg %p119
        $region26: #{tpu_custom_call.1} parent=11 // pred_check_branch
          %217 = sbr.rel (%p215) target = $region28
        $region27: #{tpu_custom_call.1} parent=11 // pred_region
          %p218 = scmp.lt.s32.totalorder %s23, 0
          %s219 = scalar_select %p218, %s23, 0
          %s220 = smul.addr %s219, 8
          %s221 = scalar_lea.vmem %s3, %s220
        $region28: #{tpu_custom_call.1} parent=11 // pred_fallthru
          _
        // Predicated region
        $region29: #{tpu_custom_call.1} parent=11 // pred_check
          %p222 = pneg %p145
        $region30: #{tpu_custom_call.1} parent=11 // pred_check_branch
          %224 = sbr.rel (%p222) target = $region32
        $region31: #{tpu_custom_call.1} parent=11 // pred_region
          %p225 = scmp.lt.s32.totalorder %s23, 0
          %s226 = scalar_select %p225, %s23, 0
          %s227 = smul.addr %s226, 8
          %s228 = scalar_lea.vmem %s4, %s227
        $region32: #{tpu_custom_call.1} parent=11 // pred_fallthru
          _
        // Predicated region
        $region33: #{tpu_custom_call.1} parent=11 // pred_check
          %p229 = pneg %p166
        $region34: #{tpu_custom_call.1} parent=11 // pred_check_branch
          %231 = sbr.rel (%p229) target = $region36
        $region35: #{tpu_custom_call.1} parent=11 // pred_region
          _
        $region36: #{tpu_custom_call.1} parent=11 // pred_fallthru
          _
      $region12: #{tpu_custom_call.1} parent=5 // pred_fallthru
        _
      %p232 = scmp.lt.s32.totalorder %s13, 2
      // Predicated region
      $region37: #{tpu_custom_call.1} parent=5 // pred_check
        %p233 = pneg %p232
      $region38: #{tpu_custom_call.1} parent=5 // pred_check_branch
        %235 = sbr.rel (%p233) target = $region40
      $region39: #{tpu_custom_call.1} parent=5 // pred_region
        _
      $region40: #{tpu_custom_call.1} parent=5 // pred_fallthru
        _
      %p236 = scmp.le.s32.totalorder 1, %s13
      %p237 = scmp.lt.s32.totalorder %s13, 3
      %p238 = pnand %p236, %p237
      %p239 = pneg %p238
      // Predicated region
      $region41: #{tpu_custom_call.1} parent=5 // pred_check
        _
      $region42: #{tpu_custom_call.1} parent=5 // pred_check_branch
        %241 = sbr.rel (%p238) target = $region44
      $region43: #{tpu_custom_call.1} parent=5 // pred_region
        %s242 = ssub.s32 %s13, 1
        %p243 = pneg %p46
        %p244 = pneg %p43
        %p245 = scmp.lt.s32.totalorder %s23, 0
        %s246 = scalar_select %p245, %s23, 0
        %s247 = smul.addr %s246, 8
        %s248 = scalar_lea.vmem %s1, %s247
        %p249 = pneg %p72
        %p250 = pneg %p69
        %p251 = pneg %p93
        %p252 = pneg %p90
        %p253 = scmp.lt.s32.totalorder %s23, 0
        %s254 = scalar_select %p253, %s23, 0
        %s255 = smul.addr %s254, 8
        %s256 = scalar_lea.vmem %s3, %s255
        %p257 = pneg %p119
        %p258 = pneg %p116
        %p259 = scmp.lt.s32.totalorder %s23, 0
        %s260 = scalar_select %p259, %s23, 0
        %s261 = smul.addr %s260, 8
        %s262 = scalar_lea.vmem %s4, %s261
        %p263 = pneg %p145
        %p264 = pneg %p142
        %p265 = pneg %p166
        %p266 = pneg %p163
        %p267 = pneg %p187
        %p268 = pneg %p184
        %p269 = scmp.lt.s32.totalorder %s23, 0
        %s270 = scalar_select %p269, %s23, 0
        %s271 = smul.addr %s270, 8
        %s272 = scalar_lea.vmem %s1, %s271
        %p273 = scmp.lt.s32.totalorder %s23, 0
        %s274 = scalar_select %p273, %s23, 0
        %s275 = smul.addr %s274, 8
        %s276 = scalar_lea.vmem %s3, %s275
        %p277 = scmp.lt.s32.totalorder %s23, 0
        %s278 = scalar_select %p277, %s23, 0
        %s279 = smul.addr %s278, 8
        %s280 = scalar_lea.vmem %s4, %s279
        %v281 = vld [vmem:[%s280] sm:$0xff]
        %v282 = vld [vmem:[%s5] sm:$0xff]
        %v283 = vld [vmem:[%s276] sm:$0xff]
        %v284 = vld [vmem:[%s2] sm:$0x1]
        %vm285 = vcmask 261120
        %v287 = vsel %vm285, %v281, 0
        %v290 = vsel %vm285, %v282, 0
        %292 = vmatprep.subr.mxu0 0.0
        %293 = vmatpush1.xpose.msra.mxu0 %v290
        %294 = vmatprep.subr.mxu0 0.0
        %295 = vmatpush1.xpose.msra.mxu0 0.0
        %296 = vmatprep.subr.mxu0 0.0
        %297 = vmatpush1.xpose.msra.mxu0 0.0
        %298 = vmatprep.subr.mxu0 0.0
        %299 = vmatpush1.xpose.msra.mxu0 0.0
        %300 = vmatprep.subr.mxu0 0.0
        %301 = vmatpush1.xpose.msra.mxu0 0.0
        %302 = vmatprep.subr.mxu0 0.0
        %303 = vmatpush1.xpose.msra.mxu0 0.0
        %304 = vmatprep.subr.mxu0 0.0
        %305 = vmatpush1.xpose.msra.mxu0 0.0
        %306 = vmatprep.subr.mxu0 0.0
        %307 = vmatpush1.xpose.msra.mxu0 0.0
        %308 = vmatprep.subr.mxu0 0.0
        %309 = vmatpush1.xpose.msra.mxu0 0.0
        %310 = vmatprep.subr.mxu0 0.0
        %311 = vmatpush1.xpose.msra.mxu0 0.0
        %312 = vmatprep.subr.mxu0 0.0
        %313 = vmatpush1.xpose.msra.mxu0 0.0
        %314 = vmatprep.subr.mxu0 0.0
        %315 = vmatpush1.xpose.msra.mxu0 0.0
        %316 = vmatprep.subr.mxu0 0.0
        %317 = vmatpush1.xpose.msra.mxu0 0.0
        %318 = vmatprep.subr.mxu0 0.0
        %319 = vmatpush1.xpose.msra.mxu0 0.0
        %320 = vmatprep.subr.mxu0 0.0
        %321 = vmatpush1.xpose.msra.mxu0 0.0
        %322 = vmatprep.subr.mxu0 0.0
        %323 = vmatpush1.xpose.msra.mxu0 0.0
        %324 = vmatprep.subr.mxu0 0.0
        %325 = vmatpush1.xpose.msra.mxu0 0.0
        %326 = vmatprep.subr.mxu0 0.0
        %327 = vmatpush1.xpose.msra.mxu0 0.0
        %328 = vmatprep.subr.mxu0 0.0
        %329 = vmatpush1.xpose.msra.mxu0 0.0
        %330 = vmatprep.subr.mxu0 0.0
        %331 = vmatpush1.xpose.msra.mxu0 0.0
        %332 = vmatprep.subr.mxu0 0.0
        %333 = vmatpush1.xpose.msra.mxu0 0.0
        %334 = vmatprep.subr.mxu0 0.0
        %335 = vmatpush1.xpose.msra.mxu0 0.0
        %336 = vmatprep.subr.mxu0 0.0
        %337 = vmatpush1.xpose.msra.mxu0 0.0
        %338 = vmatprep.subr.mxu0 0.0
        %339 = vmatpush1.xpose.msra.mxu0 0.0
        %340 = vmatprep.subr.mxu0 0.0
        %341 = vmatpush1.xpose.msra.mxu0 0.0
        %342 = vmatprep.subr.mxu0 0.0
        %343 = vmatpush1.xpose.msra.mxu0 0.0
        %344 = vmatprep.subr.mxu0 0.0
        %345 = vmatpush1.xpose.msra.mxu0 0.0
        %346 = vmatprep.subr.mxu0 0.0
        %347 = vmatpush1.xpose.msra.mxu0 0.0
        %348 = vmatprep.subr.mxu0 0.0
        %349 = vmatpush1.xpose.msra.mxu0 0.0
        %350 = vmatprep.subr.mxu0 0.0
        %351 = vmatpush1.xpose.msra.mxu0 0.0
        %352 = vmatprep.subr.mxu0 0.0
        %353 = vmatpush1.xpose.msra.mxu0 0.0
        %354 = vmatprep.subr.mxu0 0.0
        %355 = vmatpush1.xpose.msra.mxu0 0.0
        %356 = vmatprep.mubr.f32.mxu0 0.0
        %357 = vmatmul.mubr.f32.gmra.mrb[0].mxu0 %v287
        %v358 = vpop.f32.mrb[0].mxu0
        %v359 = vadd.f32 0.0, %v358
        %v360 = vpop.f32.mrb[0].mxu0
        %361 = vdwg.mxu0
        %v362 = vmul.f32 %v359, 2.0
        %v364 = vlaneseq
        %v365 = vshrl.u32 %v364, 7
        %v366 = vsub.s32 0, %v365
        %v367 = vrot.slane %v284, %v366
        %v369 = vsub.f32 %v367, %v362
        %371 = vset.pattern.permute.xlu0 0
        %372 = vperm.xlu0 %371, %v283
        %v373 = vpop.permute.xlu0 %372
        %v375 = vadd.f32 %v369, %v373
        %v376 = vmax.f32 %v375, 0.0
        %vm377 = vcmp.eq.f32.partialorder %v376, 0.0
        %v378 = vsel %vm377, 1e-16, %v376
        %v379 = vrsqrt.pop %v378
        %v380 = vmul.f32 %v378, %v379
        %vm381 = vcmp.eq.f32.partialorder %v378, inf
        %v382 = vsel %vm381, %v378, %v380
        %vm383 = vcmp.eq.f32.partialorder %v378, 0.0
        %v384 = vand.u32 %v378, 2147483648
        %v385 = vsel %vm383, %v384, %v382
        %v386 = vsel %vm377, 0.0, %v385
        %p387 = scmp.eq.s32.totalorder %s22, 0
        %p388 = scmp.eq.s32.totalorder %s23, 0
        %p389 = pnand %p387, %p388
        %p390 = pneg %p389
        // Predicated region
        $region45: #{tpu_custom_call.1} parent=43 // pred_check
          _
        $region46: #{tpu_custom_call.1} parent=43 // pred_check_branch
          %392 = sbr.rel (%p389) target = $region48
        $region47: #{tpu_custom_call.1} parent=43 // pred_region
          %vm393 = vcmask 0
          %394 = vst.msk [vmem:[#allocation3] sm:$0x1] %vm393, 0.0
          %vm395 = vcmask 57344
          %396 = vst.msk [vmem:[#allocation2] sm:$0x1] %vm395, 0.0
        $region48: #{tpu_custom_call.1} parent=43 // pred_fallthru
          _
        // Predicated region
        $region49: #{tpu_custom_call.1} parent=43 // pred_check
          %p397 = pneg %p387
        $region50: #{tpu_custom_call.1} parent=43 // pred_check_branch
          %399 = sbr.rel (%p397) target = $region52
        $region51: #{tpu_custom_call.1} parent=43 // pred_region
          %v400 = vld [vmem:[#allocation2] sm:$0x1]
          %vm401 = vcmask 64512
          %v402 = vsel %vm401, %v386, -inf
          %v403 = vrot.slane %v402, 4
          %v404 = vmax.f32 %v402, %v403
          %v405 = vrot.slane %v404, 2
          %v406 = vmax.f32 %v404, %v405
          %v407 = vrot.slane %v406, 1
          %v408 = vmax.f32 %v406, %v407
          %v409 = vmax.f32 %v400, %v408
          %vm410 = vcmask 57344
          %411 = vst.msk [vmem:[#allocation2] sm:$0x1] %vm410, %v409
        $region52: #{tpu_custom_call.1} parent=43 // pred_fallthru
          _
        %p412 = scmp.eq.s32.totalorder %s22, 1
        // Predicated region
        $region53: #{tpu_custom_call.1} parent=43 // pred_check
          %p413 = pneg %p412
        $region54: #{tpu_custom_call.1} parent=43 // pred_check_branch
          %415 = sbr.rel (%p413) target = $region56
        $region55: #{tpu_custom_call.1} parent=43 // pred_region
          %v416 = vld [vmem:[%s272] sm:$0xff]
          %v417 = vld [vmem:[%s0] sm:$0x1]
          %418 = vset.pattern.permute.xlu0 0
          %419 = vperm.xlu0 %418, %v416
          %v420 = vpop.permute.xlu0 %419
          %v421 = vlaneseq
          %v422 = vshrl.u32 %v421, 7
          %v423 = vsub.s32 0, %v422
          %v424 = vrot.slane %v417, %v423
          %vm425 = vcmp.eq.s32.totalorder %v420, %v424
          %s426 = smul.u32 %s23, 8
          %v427 = vlaneseq
          %v428 = vshrl.u32 %v427, 7
          %v429 = vstv %s426
          %v430 = vadd.s32 %v429, %v428
          %v431 = vlaneseq
          %v432 = vand.u32 %v431, 127
          %vm433 = vcmp.ne.s32.totalorder %v430, %v432
          %vm434 = vmand %vm433, %vm425
          %v435 = vsel %vm434, %v386, 0.0
          %vm436 = vcmask 64512
          %v437 = vsel %vm436, %v435, -inf
          %438 = vmax.xlane.f32.xlu0 %v437
          %v439 = vpop.xlane.xlu0 %438
          %v440 = vld [vmem:[#allocation2] sm:$0x1]
          %v442 = vlaneseq
          %v443 = vshrl.u32 %v442, 7
          %v444 = vsub.s32 0, %v443
          %v445 = vrot.slane %v440, %v444
          %v447 = vsel %vm425, %v445, 0.0
          %v448 = vadd.f32 %v386, %v447
          %v449 = vsel %vm436, %v448, inf
          %450 = vmin.xlane.f32.xlu0 %v449
          %v451 = vpop.xlane.xlu0 %450
          %v452 = vsub.f32 %v439, %v451
          %v453 = vadd.f32 %v452, 0.2
          %v454 = vmax.f32 %v453, 0.0
          %v455 = vrot.slane %v454, 4
          %v456 = vadd.f32 %v454, %v455
          %v457 = vrot.slane %v456, 2
          %v458 = vadd.f32 %v456, %v457
          %v459 = vrot.slane %v458, 1
          %v460 = vadd.f32 %v458, %v459
          %v461 = vld [vmem:[#allocation3] sm:$0x1]
          %v462 = vmul.f32 %v460, 0.125
          %v463 = vadd.f32 %v461, %v462
          %vm464 = vcmask 0
          %465 = vst.msk [vmem:[#allocation3] sm:$0x1] %vm464, %v463
        $region56: #{tpu_custom_call.1} parent=43 // pred_fallthru
          _
        // Predicated region
        $region57: #{tpu_custom_call.1} parent=43 // pred_check
          %p466 = pneg %p184
        $region58: #{tpu_custom_call.1} parent=43 // pred_check_branch
          %468 = sbr.rel (%p466) target = $region60
        $region59: #{tpu_custom_call.1} parent=43 // pred_region
          %s470 = ssub.s32 16, 16
          %471 = vsyncadd [#allocation4], %s470
          %s473 = sshll.u32 [#allocation3], 4
          %s474 = int_to_ptr.vmem [resolvable:$true] %s473
          %476 = dma.vmem_to_hbm [thread:$0]  %s474, 16, %s6, [#allocation4]
        $region60: #{tpu_custom_call.1} parent=43 // pred_fallthru
          _
        // Predicated region
        $region61: #{tpu_custom_call.1} parent=43 // pred_check
          %p477 = pneg %p184
        $region62: #{tpu_custom_call.1} parent=43 // pred_check_branch
          %479 = sbr.rel (%p477) target = $region64
        $region63: #{tpu_custom_call.1} parent=43 // pred_region
          %480 = dma.done [#allocation4], 16
        $region64: #{tpu_custom_call.1} parent=43 // pred_fallthru
          _
      $region44: #{tpu_custom_call.1} parent=5 // pred_fallthru
        _
      %p481 = scmp.le.s32.totalorder 2, %s13
      // Predicated region
      $region65: #{tpu_custom_call.1} parent=5 // pred_check
        %p482 = pneg %p481
      $region66: #{tpu_custom_call.1} parent=5 // pred_check_branch
        %484 = sbr.rel (%p482) target = $region68
      $region67: #{tpu_custom_call.1} parent=5 // pred_region
        %s485 = ssub.s32 %s13, 2
      $region68: #{tpu_custom_call.1} parent=5 // pred_fallthru
        _
    $region6: #{tpu_custom_call.1} parent=1 // loop_footer
      %s17 = sadd.s32 1, %s13
    $region7: #{tpu_custom_call.1} parent=1 // loop_footer_branch
      %12 = sbr.rel target = $region3
    $region8: #{tpu_custom_call.1} parent=1 // loop_exit
      _
    %486 = vsyncpa [#allocation4], 1
    %s487 = scalar_lea.sflag [#allocation4], 1
    %488 = vsyncpa %s487, 1

</llo_original>
